<compile_context>
chip_gen: v7x
topology: tpu7x:2x2x1
jax: 0.10.0
libtpu: 0.0.40
codegen_flags: <defaults>
</compile_context>

<pallas_src>
import jax
import jax.numpy as jnp
from jax.experimental import pallas as pl
from jax.experimental.pallas import tpu as pltpu


def _round_up(x, m):
    return (x + m - 1) // m * m


def _vmem_capacity_bytes():
    """Trace-time VMEM capacity; conservative fallback if the query fails."""
    try:
        return int(pltpu.get_tpu_info().vmem_capacity_bytes)
    except Exception:
        return 64 * 1024 * 1024  # v7x per-TensorCore size = safest assumption


def layer_scale(x, layer_scale_param, init_value=0.01, donate_x=False):
    """LayerScale forward.

    Args:
      x: (N, C, H, W) activations (f32 / bf16 / i8).
      layer_scale_param: (C,) per-channel scale (stored/applied in float32).
      init_value: construction-time init value; if exactly 0.0 the PyTorch
        forward returns x unchanged (regardless of the current parameter
        values), and so do we.
      donate_x: alias the (reshaped) input buffer onto the output.  This only
        avoids an extra full-size HBM buffer if the caller actually donates x
        at the enclosing jax.jit boundary (donate_argnums=...); otherwise XLA
        inserts a defensive copy of x (an extra HBM read+write) which roughly
        doubles the cost of this memory-bound op.  It is an HBM-footprint
        optimization, not a bandwidth one.

    Returns:
      (N, C, H, W) array in x.dtype.
    """
    if init_value == 0.0:
        # Mirrors the PyTorch forward, which gates on the construction-time
        # init_value, not on the current parameter values.
        return x

    N, C, H, W = x.shape
    HW = H * W
    NC = N * C
    x2 = x.reshape(NC, HW)  # free for contiguous NCHW

    itemsize = jnp.dtype(x.dtype).itemsize
    packing = 32 // itemsize if itemsize in (1, 2, 4) else 8  # sublane packing

    # ---- Generation-aware tile sizing (HBM roofline: biggest blocks that fit
    # the chip's VMEM -> fewest grid steps -> least fixed per-step overhead).
    vmem_cap = _vmem_capacity_bytes()
    # Total pipelined footprint (2x in + 2x out buffers): 3/8 of VMEM capped
    # at 32 MiB  ->  24 MiB on v7x (64 MiB/TC), 32 MiB on v5e/v6e (128 MiB).
    pipeline_budget = min(32 * 2**20, (vmem_cap * 3) // 8)
    block_bytes = min(8 * 2**20, pipeline_budget // 4)  # per-block target

    # Lane tile: cover the whole spatial axis when it fits (fully contiguous
    # per-row DMA), otherwise a large multiple of 128; always leave room for
    # at least `packing` rows in the block.
    thw_cap = max(128, (block_bytes // (packing * itemsize)) // 128 * 128)
    thw = min(_round_up(HW, 128), thw_cap)
    # Row tile: fill the remaining block budget, multiple of sublane packing.
    trow = (block_bytes // (thw * itemsize)) // packing * packing
    trow = max(packing, min(trow, _round_up(NC, packing)))

    grid = (pl.cdiv(NC, trow), pl.cdiv(HW, thw))
    n_row_blocks = grid[0]

    # Per-row f32 scale (gamma broadcast over batch), padded to a whole number
    # of row tiles so the in-kernel dynamic slice never reads out of bounds.
    nc_pad = n_row_blocks * trow
    scale_rows = jnp.broadcast_to(
        layer_scale_param.astype(jnp.float32)[None, :], (N, C)
    ).reshape(NC)
    scale_rows = jnp.pad(scale_rows, (0, nc_pad - NC)).reshape(nc_pad, 1)

    def kernel(scale_ref, x_ref, o_ref):
        # scale_ref: (nc_pad, 1) f32, fully resident; x_ref/o_ref: (trow, thw).
        ri = pl.program_id(0)
        start = pl.multiple_of(ri * trow, trow)
        s = scale_ref[pl.ds(start, trow), :]  # (trow, 1), lane-broadcasts
        o_ref[...] = (x_ref[...].astype(jnp.float32) * s).astype(o_ref.dtype)

    # Explicit VMEM limit: 2x in + 2x out buffers + resident scale + headroom.
    # Must exceed v5e's 16 MiB default scoped limit; stay well below v7x's
    # 64 MiB physical VMEM.
    scale_bytes = nc_pad * 4
    needed = 4 * trow * thw * itemsize + 2 * scale_bytes
    vmem_limit = int(min(vmem_cap - 8 * 2**20, needed + 8 * 2**20))
    vmem_limit = max(vmem_limit, needed + 2 * 2**20)

    kwargs = {}
    if donate_x:
        kwargs["input_output_aliases"] = {1: 0}  # x2 (arg 1) -> output 0

    out = pl.pallas_call(
        kernel,
        out_shape=jax.ShapeDtypeStruct((NC, HW), x.dtype),
        grid_spec=pltpu.PrefetchScalarGridSpec(
            num_scalar_prefetch=0,
            grid=grid,
            in_specs=[
                # Fully-resident per-row scale: full-extent block + constant
                # index_map -> fetched once, no per-step DMA stream.
                pl.BlockSpec((nc_pad, 1), lambda ri, hi: (0, 0)),
                # Lane-dense activation tile; edge blocks are masked partials.
                pl.BlockSpec((trow, thw), lambda ri, hi: (ri, hi)),
            ],
            out_specs=pl.BlockSpec((trow, thw), lambda ri, hi: (ri, hi)),
        ),
        compiler_params=pltpu.CompilerParams(
            dimension_semantics=("parallel", "parallel"),
            vmem_limit_bytes=vmem_limit,
        ),
        cost_estimate=pl.CostEstimate(
            flops=NC * HW,
            transcendentals=0,
            bytes_accessed=2 * NC * HW * itemsize + NC * 4,
        ),
        **kwargs,
    )(scale_rows, x2)

    return out.reshape(N, C, H, W)


if __name__ == "__main__":
    key = jax.random.PRNGKey(0)

    # Config mirroring the PyTorch module: nn.Parameter(init_value * ones(C)).
    N, C, H, W = 2, 4, 16, 16
    init_value = 0.01
    gamma = init_value * jnp.ones((C,), dtype=jnp.float32)

    x = jax.random.normal(key, (N, C, H, W), dtype=jnp.float32)
    out = jax.block_until_ready(layer_scale(x, gamma, init_value=init_value))
    ref = gamma.reshape(1, C, 1, 1) * x
    assert out.shape == x.shape and out.dtype == x.dtype
    assert jnp.allclose(out, ref, atol=1e-6, rtol=1e-6)

    # Non-128-multiple spatial size (ConvNeXt-style HW=49) exercising masked
    # partial edge blocks, and bf16 input exercising the 16-row sublane
    # packing path with a non-trivial gamma.
    k1, k2 = jax.random.split(key)
    C2 = 6
    gamma2 = 0.05 * jax.random.normal(k1, (C2,), dtype=jnp.float32)
    xb = jax.random.normal(k2, (2, C2, 7, 7), dtype=jnp.bfloat16)
    outb = jax.block_until_ready(layer_scale(xb, gamma2, init_value=init_value))
    refb = (xb.astype(jnp.float32) * gamma2.reshape(1, C2, 1, 1)).astype(jnp.bfloat16)
    assert outb.shape == xb.shape and outb.dtype == xb.dtype
    assert jnp.allclose(outb.astype(jnp.float32), refb.astype(jnp.float32),
                        atol=1e-2, rtol=1e-2)

    print("KERNEL_OK")
</pallas_src>

<mosaic_0001>
module attributes {stable_mosaic.version = 11 : i64} {
  func.func @kernel(%arg0: i32, %arg1: i32, %arg2: memref<8x1xf32, #tpu.memory_space<vmem>>, %arg3: memref<8x256xf32, #tpu.memory_space<vmem>>, %arg4: memref<8x256xf32, #tpu.memory_space<vmem>>) attributes {dimension_semantics = [#tpu.dimension_semantics<parallel>, #tpu.dimension_semantics<parallel>], iteration_bounds = array<i64: 1, 1>, scalar_prefetch = 0 : i64, scratch_operands = 0 : i64, tpu.core_type = #tpu.core_type<tc>, window_params = [{pipeline_mode = #tpu.pipeline_mode<synchronous>, transform_indices = @transform_0, window_bounds = array<i64: 8, 1>}, {transform_indices = @transform_1, window_bounds = array<i64: 8, 256>}, {transform_indices = @transform_2, window_bounds = array<i64: 8, 256>}]} {
    %c8_i32 = arith.constant 8 : i32
    %0 = arith.muli %arg0, %c8_i32 : i32
    %1 = tpu.assume_multiple %0, 8 : i32
    %2 = arith.index_cast %1 : i32 to index
    %c0 = arith.constant 0 : index
    %3 = vector.load %arg2[%2, %c0] : memref<8x1xf32, #tpu.memory_space<vmem>>, vector<8x1xf32>
    %c0_0 = arith.constant 0 : index
    %c0_1 = arith.constant 0 : index
    %4 = vector.load %arg3[%c0_0, %c0_1] : memref<8x256xf32, #tpu.memory_space<vmem>>, vector<8x256xf32>
    %5 = vector.broadcast %3 : vector<8x1xf32> to vector<8x256xf32>
    %6 = arith.mulf %4, %5 : vector<8x256xf32>
    %c0_2 = arith.constant 0 : index
    %c0_3 = arith.constant 0 : index
    %7 = vector.load %arg4[%c0_2, %c0_3] : memref<8x256xf32, #tpu.memory_space<vmem>>, vector<8x256xf32>
    tpu.vector_store %arg4[%c0_2, %c0_3], %6 {strides = array<i32>} : memref<8x256xf32, #tpu.memory_space<vmem>>, vector<8x256xf32>,
    return
  }
  func.func @transform_0(%arg0: i32, %arg1: i32) -> (i32, i32) {
    %c0_i32 = arith.constant 0 : i32
    %c0_i32_0 = arith.constant 0 : i32
    %c0_i32_1 = arith.constant 0 : i32
    return %c0_i32, %c0_i32_0 : i32, i32
  }
  func.func @transform_1(%arg0: i32, %arg1: i32) -> (i32, i32) {
    %c0_i32 = arith.constant 0 : i32
    return %arg0, %arg1 : i32, i32
  }
  func.func @transform_2(%arg0: i32, %arg1: i32) -> (i32, i32) {
    %c0_i32 = arith.constant 0 : i32
    return %arg0, %arg1 : i32, i32
  }
}

</mosaic_0001>

<llo_original>
// kernel: tpu_custom_call.1
$region0: #{tpu_custom_call.1}
  #allocation0 [shape = 'u32[]', space=smem, size = 0x4, offset = 0x4, fixed_abs, tag = 'smem constant byte address 0x4 - core index']
  #allocation1 [shape = 'u32[144,128]{1,0:T(1,128)}', space=vmem, size = 0x12000, scoped, tag = 'internal scratch']
  %s0 = inlined_call_operand.vmem [shape: f32[8,1], index: 0, kind: input, shape index: {}]
  %s1 = inlined_call_operand.hbm [shape: f32[8,256], index: 1, kind: input, shape index: {}]
  %s2 = inlined_call_operand.hbm [shape: f32[8,256], index: 2, kind: output, shape index: {}]
  %s3 = sld [smem:[#allocation0]]
  $region22: #{tpu_custom_call.1} parent=0
    _
  %s5 = ssub.s32 1, %s3
  %s6 = scalar_select 0, %s5, %s3
  $region1: #{tpu_custom_call.1} parent=0
    #allocation2 [shape = 'u8[8192]{0}', space=vmem, size = 0x2000, scoped, tag = 'input window, operand 1, single buffered']
    #allocation3 [shape = 's32[1]{0}', space=sflag, size = 0x4, scoped, tag = 'scoped memory for tpu_custom_call.1']
    #allocation4 [shape = 's32[1]{0}', space=sflag, size = 0x4, scoped, tag = 'scoped memory for tpu_custom_call.1']
    #allocation5 [shape = 'u8[8192]{0}', space=vmem, size = 0x2000, scoped, tag = 'output window, operand 0, single buffered']
    %7 = vsyncpa [#allocation3], 0
    %8 = vsyncpa [#allocation4], 0
    // Predicated region
    $region2: #{tpu_custom_call.1} parent=1 // pred_check
      _
    $region3: #{tpu_custom_call.1} parent=1 // pred_check_branch
      %10 = sbr.rel (0) target = $region5
    $region4: #{tpu_custom_call.1} parent=1 // pred_region
      _
    $region5: #{tpu_custom_call.1} parent=1 // pred_fallthru
      _
    // Predicated region
    $region6: #{tpu_custom_call.1} parent=1 // pred_check
      _
    $region7: #{tpu_custom_call.1} parent=1 // pred_check_branch
      %12 = sbr.rel (0) target = $region9
    $region8: #{tpu_custom_call.1} parent=1 // pred_region
      %s14 = ssub.s32 256, 256
      %15 = vsyncadd [#allocation3], %s14
      %s17 = sshll.u32 [#allocation2], 4
      %s18 = int_to_ptr.vmem [resolvable:$true] %s17
      %20 = dma.hbm_to_vmem [thread:$0]  %s1, 256, %s18, [#allocation3]
    $region9: #{tpu_custom_call.1} parent=1 // pred_fallthru
      _
    // Predicated region
    $region10: #{tpu_custom_call.1} parent=1 // pred_check
      _
    $region11: #{tpu_custom_call.1} parent=1 // pred_check_branch
      %22 = sbr.rel (0) target = $region13
    $region12: #{tpu_custom_call.1} parent=1 // pred_region
      %23 = dma.done [#allocation3], 256
    $region13: #{tpu_custom_call.1} parent=1 // pred_fallthru
      _
    %s24 = smul.u32 0, 8
    %s25 = scalar_lea.vmem %s0, %s24
    %v26 = vld [vmem:[%s25] sm:$0xff]
    %v27 = vld [vmem:[#allocation2] sm:$0xff]
    %v28 = vld [vmem:[#allocation2 + $0x8] sm:$0xff]
    %30 = vset.pattern.permute.xlu0 0
    %31 = vperm.xlu0 %30, %v26
    %v32 = vpop.permute.xlu0 %31
    %v34 = vmul.f32 %v27, %v32
    %v35 = vmul.f32 %v28, %v32
    %36 = vst [vmem:[#allocation5] sm:$0xff] %v34
    %37 = vst [vmem:[#allocation5 + $0x8] sm:$0xff] %v35
    // Predicated region
    $region14: #{tpu_custom_call.1} parent=1 // pred_check
      _
    $region15: #{tpu_custom_call.1} parent=1 // pred_check_branch
      %39 = sbr.rel (0) target = $region17
    $region16: #{tpu_custom_call.1} parent=1 // pred_region
      %s41 = ssub.s32 256, 256
      %42 = vsyncadd [#allocation4], %s41
      %s44 = sshll.u32 [#allocation5], 4
      %s45 = int_to_ptr.vmem [resolvable:$true] %s44
      %47 = dma.vmem_to_hbm [thread:$0]  %s45, 256, %s2, [#allocation4]
    $region17: #{tpu_custom_call.1} parent=1 // pred_fallthru
      _
    // Predicated region
    $region18: #{tpu_custom_call.1} parent=1 // pred_check
      _
    $region19: #{tpu_custom_call.1} parent=1 // pred_check_branch
      %49 = sbr.rel (0) target = $region21
    $region20: #{tpu_custom_call.1} parent=1 // pred_region
      %50 = dma.done [#allocation4], 256
    $region21: #{tpu_custom_call.1} parent=1 // pred_fallthru
      _
    %51 = vsyncpa [#allocation3], 1
    %52 = vsyncpa [#allocation4], 1

</llo_original>
